<compile_context>
chip_gen: v6e
topology: v6e:2x2x1
jax: 0.10.0
libtpu: 0.0.40
codegen_flags: <defaults>
</compile_context>

<pallas_src>
import jax
import jax.numpy as jnp
from jax.experimental import pallas as pl
from jax.experimental.pallas import tpu as pltpu

BN_EPS = 1e-5
LANE = 128


def _round_up(x, m):
    return ((x + m - 1) // m) * m


def _tpu_vmem_capacity_bytes():
    try:
        return int(pltpu.get_tpu_info().vmem_capacity_bytes)
    except Exception:
        return 64 * 1024 * 1024  # conservative (v7x-sized) fallback


def _discrim_kernel(x_ref, w1_ref, b1_ref, w2_ref, b2_ref, w3_ref, b3_ref,
                    out_ref, acc_ref):
    """Fused 3-layer MLP head, K-tiled over n_feats, BN folded into W2'/b2', W3'/b3'.

    x/W1 may be bf16 (MXU inputs); accumulation and all elementwise math are f32.
    Output is a lane-dense (TB, TPAD) softmax tile, written on the last K step.
    """
    k = pl.program_id(1)

    @pl.when(k == 0)
    def _():
        acc_ref[...] = jnp.zeros_like(acc_ref)

    # ---- hidden_1 partial matmul over this K tile (f32 accumulation) ----
    acc_ref[...] += jnp.dot(x_ref[...], w1_ref[...],
                            preferred_element_type=jnp.float32)

    @pl.when(k == pl.num_programs(1) - 1)
    def _():
        # ---- bias + ReLU ----
        h1 = jnp.maximum(acc_ref[...] + b1_ref[...], 0.0)
        # ---- hidden_2 (BN1 + Dropout folded / identity) ----
        h2 = jnp.dot(h1, w2_ref[...], preferred_element_type=jnp.float32) + b2_ref[...]
        # ---- hidden_3 (BN2 + Dropout folded); padded target lanes get -1e30 bias ----
        logits = jnp.dot(h2, w3_ref[...], preferred_element_type=jnp.float32) + b3_ref[...]
        # ---- softmax over the (padded) targets axis ----
        m = jnp.max(logits, axis=1, keepdims=True)
        e = jnp.exp(logits - m)
        denom = jnp.sum(e, axis=1, keepdims=True)
        out_ref[...] = e * pl.reciprocal(denom, approx=True)


def discrim_net_forward(x, fp, n_targets):
    """x: (B, n_feats) f32. fp: folded, lane-padded params from fold_params()."""
    B, F = x.shape
    H1P = fp["w1"].shape[1]
    H2P = fp["w2"].shape[1]
    TPAD = fp["w3"].shape[1]
    w1_dtype = fp["w1"].dtype
    x_bytes = jnp.dtype(w1_dtype).itemsize
    w1_bytes = x_bytes

    # ---- batch tile: fill the MXU M dim for big batches, stay tight for tiny ones ----
    if B >= 256:
        TB = 256
    elif B >= 128:
        TB = 128
    else:
        TB = _round_up(B, 8)
    B_pad = _round_up(B, TB)
    nb = B_pad // TB

    # ---- per-generation VMEM budget (v7x: 64 MiB physical; v5e/v6e: 128 MiB) ----
    vmem_phys = _tpu_vmem_capacity_bytes()
    vmem_target = min(vmem_phys * 3 // 4, 64 * 1024 * 1024)

    # VMEM resident across the whole grid: single-buffered W2'/W3'/biases, the f32
    # h1 accumulator, the double-buffered output tile, plus compiler-scratch slack.
    resident = (
        H1P * H2P * 4 + H2P * TPAD * 4        # W2', W3' (f32)
        + (H1P + H2P + TPAD) * 4              # biases
        + TB * H1P * 4                        # h1 accumulator scratch
        + 2 * TB * TPAD * 4                   # output double buffer
        + 2 * 1024 * 1024                     # slack
    )

    # ---- K tiling over n_feats: double-buffered (TB,TK) x and (TK,H1P) W1 streams ----
    per_k = 2 * (TB * x_bytes + H1P * w1_bytes)
    tk_max = max((vmem_target - resident) // per_k, 128)
    if F <= tk_max:
        TK, F_pad, nk = F, F, 1                    # single K step: block == full n_feats
    else:
        TK = max((tk_max // 128) * 128, 128)       # lane-aligned K tile
        F_pad = _round_up(F, TK)
        nk = F_pad // TK

    est_usage = resident + 2 * (TB * TK * x_bytes + TK * H1P * w1_bytes)
    vmem_limit = int(min(max(vmem_target, est_usage), vmem_phys - 2 * 1024 * 1024))

    # ---- pad x (batch + features) and W1 rows; cast x to the W1/MXU dtype here ----
    x_p = x.astype(w1_dtype)
    w1 = fp["w1"]
    if B_pad != B or F_pad != F:
        x_p = jnp.pad(x_p, ((0, B_pad - B), (0, F_pad - F)))
    if F_pad != F:
        w1 = jnp.pad(w1, ((0, F_pad - F), (0, 0)))

    args = (x_p, w1, fp["b1"], fp["w2"], fp["b2"], fp["w3"], fp["b3"])

    flops = 2 * B_pad * (F_pad * H1P + H1P * H2P + H2P * TPAD)
    transcendentals = B_pad * TPAD  # exp
    bytes_accessed = int(sum(int(a.nbytes) for a in args)) + B_pad * TPAD * 4

    def build(single_buffer_resident):
        def const_spec(shape):
            # Constant-index operands never change block -> second buffer is waste.
            if single_buffer_resident:
                return pl.BlockSpec(shape, lambda i, k: (0, 0),
                                    pipeline_mode=pl.Buffered(1))
            return pl.BlockSpec(shape, lambda i, k: (0, 0))

        return pl.pallas_call(
            _discrim_kernel,
            out_shape=jax.ShapeDtypeStruct((B_pad, TPAD), jnp.float32),
            grid_spec=pltpu.PrefetchScalarGridSpec(
                num_scalar_prefetch=0,
                grid=(nb, nk),                                      # reduction axis last
                in_specs=[
                    pl.BlockSpec((TB, TK), lambda i, k: (i, k)),    # x: batch & K tiled
                    pl.BlockSpec((TK, H1P), lambda i, k: (k, 0)),   # W1: K tiled (dbl-buf)
                    const_spec((1, H1P)),                           # b1
                    const_spec((H1P, H2P)),                         # W2' (resident)
                    const_spec((1, H2P)),                           # b2'
                    const_spec((H2P, TPAD)),                        # W3' (resident)
                    const_spec((1, TPAD)),                          # b3'
                ],
                out_specs=pl.BlockSpec((TB, TPAD), lambda i, k: (i, 0)),
                scratch_shapes=[pltpu.VMEM((TB, H1P), jnp.float32)],
            ),
            compiler_params=pltpu.CompilerParams(
                dimension_semantics=("parallel", "arbitrary"),      # megacore on batch
                vmem_limit_bytes=vmem_limit,
            ),
            cost_estimate=pl.CostEstimate(
                flops=flops,
                transcendentals=transcendentals,
                bytes_accessed=bytes_accessed,
            ),
        )

    try:
        out = build(True)(*args)
    except Exception:
        # Fallback if this jax build rejects pipeline_mode / Buffered(1); the resident
        # operands are small, so default double-buffering costs little VMEM.
        out = build(False)(*args)

    return out[:B, :n_targets]


def fold_params(p, n_targets, w1_dtype=jnp.bfloat16):
    """Fold eval-mode BN1/BN2 into (W2,b2)/(W3,b3) and lane-pad H1/H2/targets to 128.

    Only W1 (the big, HBM-dominant matrix) is quantized to `w1_dtype` (bf16 default;
    jnp.float8_e4m3fn is a valid choice on v7x). The folded W2'/W3' stay f32 so BN
    scales with tiny running_var do not amplify quantization error.
    """
    H1 = p["w1"].shape[1]
    H2 = p["w2"].shape[1]
    H1P = _round_up(H1, LANE)
    H2P = _round_up(H2, LANE)
    TPAD = _round_up(n_targets, LANE)

    s1 = p["g1"] * jax.lax.rsqrt(p["v1"] + BN_EPS)     # (1, H1)
    s2 = p["g2"] * jax.lax.rsqrt(p["v2"] + BN_EPS)     # (1, H2)

    w2f = p["w2"] * s1.T                               # scale rows of W2
    b2f = p["b2"] + (p["bt1"] - p["m1"] * s1) @ p["w2"]
    w3f = p["w3"] * s2.T
    b3f = p["b3"] + (p["bt2"] - p["m2"] * s2) @ p["w3"]

    # Zero-pad hidden dims (padded h1/h2 lanes stay exactly 0: matching W rows/cols and
    # biases are 0); padded target lanes get a -1e30 bias so softmax is unchanged.
    w1p = jnp.zeros((p["w1"].shape[0], H1P), jnp.float32).at[:, :H1].set(p["w1"])
    b1p = jnp.zeros((1, H1P), jnp.float32).at[:, :H1].set(p["b1"])
    w2p = jnp.zeros((H1P, H2P), jnp.float32).at[:H1, :H2].set(w2f)
    b2p = jnp.zeros((1, H2P), jnp.float32).at[:, :H2].set(b2f)
    w3p = jnp.zeros((H2P, TPAD), jnp.float32).at[:H2, :n_targets].set(w3f)
    b3p = jnp.full((1, TPAD), -1e30, jnp.float32).at[:, :n_targets].set(b3f)

    return {
        "w1": w1p.astype(w1_dtype),
        "b1": b1p,
        "w2": w2p,
        "b2": b2p,
        "w3": w3p,
        "b3": b3p,
    }


def init_params(key, n_feats, n_hidden_u, n_hidden_t_enc, n_targets):
    ks = jax.random.split(key, 6)
    scale = 0.1
    return {
        # Linear weights stored as (in, out)  (== PyTorch weight.T)
        "w1": scale * jax.random.normal(ks[0], (n_feats, n_hidden_u), jnp.float32),
        "b1": scale * jax.random.normal(ks[1], (1, n_hidden_u), jnp.float32),
        "w2": scale * jax.random.normal(ks[2], (n_hidden_u, n_hidden_t_enc), jnp.float32),
        "b2": scale * jax.random.normal(ks[3], (1, n_hidden_t_enc), jnp.float32),
        "w3": scale * jax.random.normal(ks[4], (n_hidden_t_enc, n_targets), jnp.float32),
        "b3": scale * jax.random.normal(ks[5], (1, n_targets), jnp.float32),
        # BatchNorm1d defaults: gamma=1, beta=0, running_mean=0, running_var=1
        "g1": jnp.ones((1, n_hidden_u), jnp.float32),
        "bt1": jnp.zeros((1, n_hidden_u), jnp.float32),
        "m1": jnp.zeros((1, n_hidden_u), jnp.float32),
        "v1": jnp.ones((1, n_hidden_u), jnp.float32),
        "g2": jnp.ones((1, n_hidden_t_enc), jnp.float32),
        "bt2": jnp.zeros((1, n_hidden_t_enc), jnp.float32),
        "m2": jnp.zeros((1, n_hidden_t_enc), jnp.float32),
        "v2": jnp.ones((1, n_hidden_t_enc), jnp.float32),
    }


def reference_forward(x, p):
    """Plain-JAX f32 reference with the original (unfolded) eval-mode semantics."""
    h1 = jnp.maximum(x @ p["w1"] + p["b1"], 0.0)
    h1 = (h1 - p["m1"]) / jnp.sqrt(p["v1"] + BN_EPS) * p["g1"] + p["bt1"]
    h2 = h1 @ p["w2"] + p["b2"]
    h2 = (h2 - p["m2"]) / jnp.sqrt(p["v2"] + BN_EPS) * p["g2"] + p["bt2"]
    return jax.nn.softmax(h2 @ p["w3"] + p["b3"], axis=1)


def folded_reference(x, fp, n_targets):
    """Plain-JAX reference that mirrors the kernel's folded / padded / mixed-precision math."""
    wd = fp["w1"].dtype
    h1 = jnp.maximum(
        jnp.dot(x.astype(wd), fp["w1"], preferred_element_type=jnp.float32) + fp["b1"], 0.0)
    h2 = jnp.dot(h1, fp["w2"], preferred_element_type=jnp.float32) + fp["b2"]
    logits = jnp.dot(h2, fp["w3"], preferred_element_type=jnp.float32) + fp["b3"]
    return jax.nn.softmax(logits, axis=1)[:, :n_targets]


if __name__ == "__main__":
    # Small shapes consistent with the module's constructor arguments.
    batch, n_feats, n_hidden_u, n_hidden_t_enc, n_targets = 8, 32, 32, 32, 4

    key = jax.random.PRNGKey(0)
    kx, kp = jax.random.split(key)
    x = jax.random.normal(kx, (batch, n_feats), jnp.float32)
    raw = init_params(kp, n_feats, n_hidden_u, n_hidden_t_enc, n_targets)

    # W1 in bf16 for the MXU (halved HBM/VMEM traffic on the dominant stream); folded
    # W2'/W3', biases, accumulation and all elementwise math remain f32.
    folded = fold_params(raw, n_targets, w1_dtype=jnp.bfloat16)

    y = jax.block_until_ready(discrim_net_forward(x, folded, n_targets))

    y_folded = folded_reference(x, folded, n_targets)   # same math as the kernel
    y_f32 = reference_forward(x, raw)                   # original f32 eval-mode module

    assert y.shape == (batch, n_targets)
    # Kernel vs identical-math JAX reference (slack only for approx reciprocal / K-tiled
    # accumulation order).
    assert jnp.allclose(y, y_folded, atol=5e-3, rtol=5e-3)
    # Kernel vs original f32 module semantics (bf16 W1 + BN fold + approx recip).
    assert jnp.allclose(y, y_f32, atol=1e-2, rtol=1e-2)
    assert jnp.allclose(jnp.sum(y, axis=1), jnp.ones((batch,)), atol=1e-2)

    print("KERNEL_OK")
</pallas_src>

<mosaic_0001>
module attributes {stable_mosaic.version = 11 : i64} {
  func.func @_discrim_kernel(%arg0: i32, %arg1: i32, %arg2: memref<8x32xbf16, #tpu.memory_space<vmem>>, %arg3: memref<32x128xbf16, #tpu.memory_space<vmem>>, %arg4: memref<1x128xf32, #tpu.memory_space<vmem>>, %arg5: memref<128x128xf32, #tpu.memory_space<vmem>>, %arg6: memref<1x128xf32, #tpu.memory_space<vmem>>, %arg7: memref<128x128xf32, #tpu.memory_space<vmem>>, %arg8: memref<1x128xf32, #tpu.memory_space<vmem>>, %arg9: memref<8x128xf32, #tpu.memory_space<vmem>>, %arg10: memref<8x128xf32, #tpu.memory_space<vmem>>) attributes {dimension_semantics = [#tpu.dimension_semantics<parallel>, #tpu.dimension_semantics<arbitrary>], iteration_bounds = array<i64: 1, 1>, scalar_prefetch = 0 : i64, scratch_operands = 1 : i64, tpu.core_type = #tpu.core_type<tc>, window_params = [{transform_indices = @transform_0, window_bounds = array<i64: 8, 32>}, {transform_indices = @transform_1, window_bounds = array<i64: 32, 128>}, {pipeline_mode = #tpu.pipeline_mode<synchronous>, transform_indices = @transform_2, window_bounds = array<i64: 1, 128>}, {pipeline_mode = #tpu.pipeline_mode<synchronous>, transform_indices = @transform_3, window_bounds = array<i64: 128, 128>}, {pipeline_mode = #tpu.pipeline_mode<synchronous>, transform_indices = @transform_4, window_bounds = array<i64: 1, 128>}, {pipeline_mode = #tpu.pipeline_mode<synchronous>, transform_indices = @transform_5, window_bounds = array<i64: 128, 128>}, {pipeline_mode = #tpu.pipeline_mode<synchronous>, transform_indices = @transform_6, window_bounds = array<i64: 1, 128>}, {transform_indices = @transform_7, window_bounds = array<i64: 8, 128>}]} {
    %c0_i32 = arith.constant 0 : i32
    %0 = arith.cmpi eq, %arg1, %c0_i32 : i32
    %1 = arith.extui %0 : i1 to i32
    %c0_i32_0 = arith.constant 0 : i32
    %2 = arith.cmpi ne, %1, %c0_i32_0 : i32
    scf.if %2 {
      %cst_10 = arith.constant 0.000000e+00 : f32
      %12 = vector.broadcast %cst_10 : f32 to vector<8x128xf32>
      %c0_11 = arith.constant 0 : index
      %c0_12 = arith.constant 0 : index
      %13 = vector.load %arg10[%c0_11, %c0_12] : memref<8x128xf32, #tpu.memory_space<vmem>>, vector<8x128xf32>
      tpu.vector_store %arg10[%c0_11, %c0_12], %12 {strides = array<i32>} : memref<8x128xf32, #tpu.memory_space<vmem>>, vector<8x128xf32>,
    } else {
    }
    %c0 = arith.constant 0 : index
    %c0_1 = arith.constant 0 : index
    %3 = vector.load %arg10[%c0, %c0_1] : memref<8x128xf32, #tpu.memory_space<vmem>>, vector<8x128xf32>
    %c0_2 = arith.constant 0 : index
    %c0_3 = arith.constant 0 : index
    %4 = vector.load %arg2[%c0_2, %c0_3] : memref<8x32xbf16, #tpu.memory_space<vmem>>, vector<8x32xbf16>
    %c0_4 = arith.constant 0 : index
    %c0_5 = arith.constant 0 : index
    %5 = vector.load %arg3[%c0_4, %c0_5] : memref<32x128xbf16, #tpu.memory_space<vmem>>, vector<32x128xbf16>
    %cst = arith.constant dense<0.000000e+00> : vector<8x128xf32>
    %6 = tpu.matmul %4, %5, %cst {dimension_numbers = #tpu.dot_dimension_numbers<[1], [0], [0], [1], [0, 0, 1, 1], [], []>} : vector<8x32xbf16>, vector<32x128xbf16>, vector<8x128xf32> -> vector<8x128xf32>
    %7 = arith.addf %3, %6 : vector<8x128xf32>
    %c0_6 = arith.constant 0 : index
    %c0_7 = arith.constant 0 : index
    %8 = vector.load %arg10[%c0_6, %c0_7] : memref<8x128xf32, #tpu.memory_space<vmem>>, vector<8x128xf32>
    tpu.vector_store %arg10[%c0_6, %c0_7], %7 {strides = array<i32>} : memref<8x128xf32, #tpu.memory_space<vmem>>, vector<8x128xf32>,
    %c0_i32_8 = arith.constant 0 : i32
    %9 = arith.cmpi eq, %arg1, %c0_i32_8 : i32
    %10 = arith.extui %9 : i1 to i32
    %c0_i32_9 = arith.constant 0 : i32
    %11 = arith.cmpi ne, %10, %c0_i32_9 : i32
    scf.if %11 {
      %c0_10 = arith.constant 0 : index
      %c0_11 = arith.constant 0 : index
      %12 = vector.load %arg10[%c0_10, %c0_11] : memref<8x128xf32, #tpu.memory_space<vmem>>, vector<8x128xf32>
      %c0_12 = arith.constant 0 : index
      %c0_13 = arith.constant 0 : index
      %13 = vector.load %arg4[%c0_12, %c0_13] : memref<1x128xf32, #tpu.memory_space<vmem>>, vector<1x128xf32>
      %14 = vector.broadcast %13 : vector<1x128xf32> to vector<8x128xf32>
      %15 = arith.addf %12, %14 : vector<8x128xf32>
      %cst_14 = arith.constant 0.000000e+00 : f32
      %16 = vector.broadcast %cst_14 : f32 to vector<8x128xf32>
      %17 = arith.maximumf %15, %16 : vector<8x128xf32>
      %c0_15 = arith.constant 0 : index
      %c0_16 = arith.constant 0 : index
      %18 = vector.load %arg5[%c0_15, %c0_16] : memref<128x128xf32, #tpu.memory_space<vmem>>, vector<128x128xf32>
      %cst_17 = arith.constant dense<0.000000e+00> : vector<8x128xf32>
      %19 = tpu.matmul %17, %18, %cst_17 {dimension_numbers = #tpu.dot_dimension_numbers<[1], [0], [0], [1], [0, 0, 1, 1], [], []>} : vector<8x128xf32>, vector<128x128xf32>, vector<8x128xf32> -> vector<8x128xf32>
      %c0_18 = arith.constant 0 : index
      %c0_19 = arith.constant 0 : index
      %20 = vector.load %arg6[%c0_18, %c0_19] : memref<1x128xf32, #tpu.memory_space<vmem>>, vector<1x128xf32>
      %21 = vector.broadcast %20 : vector<1x128xf32> to vector<8x128xf32>
      %22 = arith.addf %19, %21 : vector<8x128xf32>
      %c0_20 = arith.constant 0 : index
      %c0_21 = arith.constant 0 : index
      %23 = vector.load %arg7[%c0_20, %c0_21] : memref<128x128xf32, #tpu.memory_space<vmem>>, vector<128x128xf32>
      %cst_22 = arith.constant dense<0.000000e+00> : vector<8x128xf32>
      %24 = tpu.matmul %22, %23, %cst_22 {dimension_numbers = #tpu.dot_dimension_numbers<[1], [0], [0], [1], [0, 0, 1, 1], [], []>} : vector<8x128xf32>, vector<128x128xf32>, vector<8x128xf32> -> vector<8x128xf32>
      %c0_23 = arith.constant 0 : index
      %c0_24 = arith.constant 0 : index
      %25 = vector.load %arg8[%c0_23, %c0_24] : memref<1x128xf32, #tpu.memory_space<vmem>>, vector<1x128xf32>
      %26 = vector.broadcast %25 : vector<1x128xf32> to vector<8x128xf32>
      %27 = arith.addf %24, %26 : vector<8x128xf32>
      %cst_25 = arith.constant dense<0xFF800000> : vector<8xf32>
      %28 = vector.multi_reduction <maximumf>, %27, %cst_25 [1] : vector<8x128xf32> to vector<8xf32>
      %29 = vector.shape_cast %28 : vector<8xf32> to vector<8x1xf32>
      %30 = vector.broadcast %29 : vector<8x1xf32> to vector<8x128xf32>
      %31 = arith.subf %27, %30 : vector<8x128xf32>
      %32 = math.exp %31 : vector<8x128xf32>
      %cst_26 = arith.constant dense<0.000000e+00> : vector<8xf32>
      %33 = vector.multi_reduction <add>, %32, %cst_26 [1] : vector<8x128xf32> to vector<8xf32>
      %34 = vector.shape_cast %33 : vector<8xf32> to vector<8x1xf32>
      %35 = tpu.reciprocal %34 {approx = true} : vector<8x1xf32> -> vector<8x1xf32>
      %36 = vector.broadcast %35 : vector<8x1xf32> to vector<8x128xf32>
      %37 = arith.mulf %32, %36 : vector<8x128xf32>
      %c0_27 = arith.constant 0 : index
      %c0_28 = arith.constant 0 : index
      %38 = vector.load %arg9[%c0_27, %c0_28] : memref<8x128xf32, #tpu.memory_space<vmem>>, vector<8x128xf32>
      tpu.vector_store %arg9[%c0_27, %c0_28], %37 {strides = array<i32>} : memref<8x128xf32, #tpu.memory_space<vmem>>, vector<8x128xf32>,
    } else {
    }
    return
  }
  func.func @transform_0(%arg0: i32, %arg1: i32) -> (i32, i32) {
    %c0_i32 = arith.constant 0 : i32
    return %arg0, %arg1 : i32, i32
  }
  func.func @transform_1(%arg0: i32, %arg1: i32) -> (i32, i32) {
    %c0_i32 = arith.constant 0 : i32
    %c0_i32_0 = arith.constant 0 : i32
    return %arg1, %c0_i32 : i32, i32
  }
  func.func @transform_2(%arg0: i32, %arg1: i32) -> (i32, i32) {
    %c0_i32 = arith.constant 0 : i32
    %c0_i32_0 = arith.constant 0 : i32
    %c0_i32_1 = arith.constant 0 : i32
    return %c0_i32, %c0_i32_0 : i32, i32
  }
  func.func @transform_3(%arg0: i32, %arg1: i32) -> (i32, i32) {
    %c0_i32 = arith.constant 0 : i32
    %c0_i32_0 = arith.constant 0 : i32
    %c0_i32_1 = arith.constant 0 : i32
    return %c0_i32, %c0_i32_0 : i32, i32
  }
  func.func @transform_4(%arg0: i32, %arg1: i32) -> (i32, i32) {
    %c0_i32 = arith.constant 0 : i32
    %c0_i32_0 = arith.constant 0 : i32
    %c0_i32_1 = arith.constant 0 : i32
    return %c0_i32, %c0_i32_0 : i32, i32
  }
  func.func @transform_5(%arg0: i32, %arg1: i32) -> (i32, i32) {
    %c0_i32 = arith.constant 0 : i32
    %c0_i32_0 = arith.constant 0 : i32
    %c0_i32_1 = arith.constant 0 : i32
    return %c0_i32, %c0_i32_0 : i32, i32
  }
  func.func @transform_6(%arg0: i32, %arg1: i32) -> (i32, i32) {
    %c0_i32 = arith.constant 0 : i32
    %c0_i32_0 = arith.constant 0 : i32
    %c0_i32_1 = arith.constant 0 : i32
    return %c0_i32, %c0_i32_0 : i32, i32
  }
  func.func @transform_7(%arg0: i32, %arg1: i32) -> (i32, i32) {
    %c0_i32 = arith.constant 0 : i32
    %c0_i32_0 = arith.constant 0 : i32
    return %arg0, %c0_i32 : i32, i32
  }
}

module attributes {stable_mosaic.version = 11 : i64} {
  func.func @_discrim_kernel(%arg0: i32, %arg1: i32, %arg2: memref<8x32xbf16, #tpu.memory_space<vmem>>, %arg3: memref<32x128xbf16, #tpu.memory_space<vmem>>, %arg4: memref<1x128xf32, #tpu.memory_space<vmem>>, %arg5: memref<128x128xf32, #tpu.memory_space<vmem>>, %arg6: memref<1x128xf32, #tpu.memory_space<vmem>>, %arg7: memref<128x128xf32, #tpu.memory_space<vmem>>, %arg8: memref<1x128xf32, #tpu.memory_space<vmem>>, %arg9: memref<8x128xf32, #tpu.memory_space<vmem>>, %arg10: memref<8x128xf32, #tpu.memory_space<vmem>>) attributes {dimension_semantics = [#tpu.dimension_semantics<parallel>, #tpu.dimension_semantics<arbitrary>], iteration_bounds = array<i64: 1, 1>, scalar_prefetch = 0 : i64, scratch_operands = 1 : i64, tpu.core_type = #tpu.core_type<tc>, window_params = [{transform_indices = @transform_0, window_bounds = array<i64: 8, 32>}, {transform_indices = @transform_1, window_bounds = array<i64: 32, 128>}, {pipeline_mode = #tpu.pipeline_mode<synchronous>, transform_indices = @transform_2, window_bounds = array<i64: 1, 128>}, {pipeline_mode = #tpu.pipeline_mode<synchronous>, transform_indices = @transform_3, window_bounds = array<i64: 128, 128>}, {pipeline_mode = #tpu.pipeline_mode<synchronous>, transform_indices = @transform_4, window_bounds = array<i64: 1, 128>}, {pipeline_mode = #tpu.pipeline_mode<synchronous>, transform_indices = @transform_5, window_bounds = array<i64: 128, 128>}, {pipeline_mode = #tpu.pipeline_mode<synchronous>, transform_indices = @transform_6, window_bounds = array<i64: 1, 128>}, {transform_indices = @transform_7, window_bounds = array<i64: 8, 128>}]} {
    %c0_i32 = arith.constant 0 : i32
    %0 = arith.cmpi eq, %arg1, %c0_i32 : i32
    %1 = arith.extui %0 : i1 to i32
    %c0_i32_0 = arith.constant 0 : i32
    %2 = arith.cmpi ne, %1, %c0_i32_0 : i32
    scf.if %2 {
      %cst_10 = arith.constant 0.000000e+00 : f32
      %12 = vector.broadcast %cst_10 : f32 to vector<8x128xf32>
      %c0_11 = arith.constant 0 : index
      %c0_12 = arith.constant 0 : index
      %13 = vector.load %arg10[%c0_11, %c0_12] : memref<8x128xf32, #tpu.memory_space<vmem>>, vector<8x128xf32>
      tpu.vector_store %arg10[%c0_11, %c0_12], %12 {strides = array<i32>} : memref<8x128xf32, #tpu.memory_space<vmem>>, vector<8x128xf32>,
    } else {
    }
    %c0 = arith.constant 0 : index
    %c0_1 = arith.constant 0 : index
    %3 = vector.load %arg10[%c0, %c0_1] : memref<8x128xf32, #tpu.memory_space<vmem>>, vector<8x128xf32>
    %c0_2 = arith.constant 0 : index
    %c0_3 = arith.constant 0 : index
    %4 = vector.load %arg2[%c0_2, %c0_3] : memref<8x32xbf16, #tpu.memory_space<vmem>>, vector<8x32xbf16>
    %c0_4 = arith.constant 0 : index
    %c0_5 = arith.constant 0 : index
    %5 = vector.load %arg3[%c0_4, %c0_5] : memref<32x128xbf16, #tpu.memory_space<vmem>>, vector<32x128xbf16>
    %cst = arith.constant dense<0.000000e+00> : vector<8x128xf32>
    %6 = tpu.matmul %4, %5, %cst {dimension_numbers = #tpu.dot_dimension_numbers<[1], [0], [0], [1], [0, 0, 1, 1], [], []>} : vector<8x32xbf16>, vector<32x128xbf16>, vector<8x128xf32> -> vector<8x128xf32>
    %7 = arith.addf %3, %6 : vector<8x128xf32>
    %c0_6 = arith.constant 0 : index
    %c0_7 = arith.constant 0 : index
    %8 = vector.load %arg10[%c0_6, %c0_7] : memref<8x128xf32, #tpu.memory_space<vmem>>, vector<8x128xf32>
    tpu.vector_store %arg10[%c0_6, %c0_7], %7 {strides = array<i32>} : memref<8x128xf32, #tpu.memory_space<vmem>>, vector<8x128xf32>,
    %c0_i32_8 = arith.constant 0 : i32
    %9 = arith.cmpi eq, %arg1, %c0_i32_8 : i32
    %10 = arith.extui %9 : i1 to i32
    %c0_i32_9 = arith.constant 0 : i32
    %11 = arith.cmpi ne, %10, %c0_i32_9 : i32
    scf.if %11 {
      %c0_10 = arith.constant 0 : index
      %c0_11 = arith.constant 0 : index
      %12 = vector.load %arg10[%c0_10, %c0_11] : memref<8x128xf32, #tpu.memory_space<vmem>>, vector<8x128xf32>
      %c0_12 = arith.constant 0 : index
      %c0_13 = arith.constant 0 : index
      %13 = vector.load %arg4[%c0_12, %c0_13] : memref<1x128xf32, #tpu.memory_space<vmem>>, vector<1x128xf32>
      %14 = vector.broadcast %13 : vector<1x128xf32> to vector<8x128xf32>
      %15 = arith.addf %12, %14 : vector<8x128xf32>
      %cst_14 = arith.constant 0.000000e+00 : f32
      %16 = vector.broadcast %cst_14 : f32 to vector<8x128xf32>
      %17 = arith.maximumf %15, %16 : vector<8x128xf32>
      %c0_15 = arith.constant 0 : index
      %c0_16 = arith.constant 0 : index
      %18 = vector.load %arg5[%c0_15, %c0_16] : memref<128x128xf32, #tpu.memory_space<vmem>>, vector<128x128xf32>
      %cst_17 = arith.constant dense<0.000000e+00> : vector<8x128xf32>
      %19 = tpu.matmul %17, %18, %cst_17 {dimension_numbers = #tpu.dot_dimension_numbers<[1], [0], [0], [1], [0, 0, 1, 1], [], []>} : vector<8x128xf32>, vector<128x128xf32>, vector<8x128xf32> -> vector<8x128xf32>
      %c0_18 = arith.constant 0 : index
      %c0_19 = arith.constant 0 : index
      %20 = vector.load %arg6[%c0_18, %c0_19] : memref<1x128xf32, #tpu.memory_space<vmem>>, vector<1x128xf32>
      %21 = vector.broadcast %20 : vector<1x128xf32> to vector<8x128xf32>
      %22 = arith.addf %19, %21 : vector<8x128xf32>
      %c0_20 = arith.constant 0 : index
      %c0_21 = arith.constant 0 : index
      %23 = vector.load %arg7[%c0_20, %c0_21] : memref<128x128xf32, #tpu.memory_space<vmem>>, vector<128x128xf32>
      %cst_22 = arith.constant dense<0.000000e+00> : vector<8x128xf32>
      %24 = tpu.matmul %22, %23, %cst_22 {dimension_numbers = #tpu.dot_dimension_numbers<[1], [0], [0], [1], [0, 0, 1, 1], [], []>} : vector<8x128xf32>, vector<128x128xf32>, vector<8x128xf32> -> vector<8x128xf32>
      %c0_23 = arith.constant 0 : index
      %c0_24 = arith.constant 0 : index
      %25 = vector.load %arg8[%c0_23, %c0_24] : memref<1x128xf32, #tpu.memory_space<vmem>>, vector<1x128xf32>
      %26 = vector.broadcast %25 : vector<1x128xf32> to vector<8x128xf32>
      %27 = arith.addf %24, %26 : vector<8x128xf32>
      %cst_25 = arith.constant dense<0xFF800000> : vector<8xf32>
      %28 = vector.multi_reduction <maximumf>, %27, %cst_25 [1] : vector<8x128xf32> to vector<8xf32>
      %29 = vector.shape_cast %28 : vector<8xf32> to vector<8x1xf32>
      %30 = vector.broadcast %29 : vector<8x1xf32> to vector<8x128xf32>
      %31 = arith.subf %27, %30 : vector<8x128xf32>
      %32 = math.exp %31 : vector<8x128xf32>
      %cst_26 = arith.constant dense<0.000000e+00> : vector<8xf32>
      %33 = vector.multi_reduction <add>, %32, %cst_26 [1] : vector<8x128xf32> to vector<8xf32>
      %34 = vector.shape_cast %33 : vector<8xf32> to vector<8x1xf32>
      %35 = tpu.reciprocal %34 {approx = true} : vector<8x1xf32> -> vector<8x1xf32>
      %36 = vector.broadcast %35 : vector<8x1xf32> to vector<8x128xf32>
      %37 = arith.mulf %32, %36 : vector<8x128xf32>
      %c0_27 = arith.constant 0 : index
      %c0_28 = arith.constant 0 : index
      %38 = vector.load %arg9[%c0_27, %c0_28] : memref<8x128xf32, #tpu.memory_space<vmem>>, vector<8x128xf32>
      tpu.vector_store %arg9[%c0_27, %c0_28], %37 {strides = array<i32>} : memref<8x128xf32, #tpu.memory_space<vmem>>, vector<8x128xf32>,
    } else {
    }
    return
  }
  func.func @transform_0(%arg0: i32, %arg1: i32) -> (i32, i32) {
    %c0_i32 = arith.constant 0 : i32
    return %arg0, %arg1 : i32, i32
  }
  func.func @transform_1(%arg0: i32, %arg1: i32) -> (i32, i32) {
    %c0_i32 = arith.constant 0 : i32
    %c0_i32_0 = arith.constant 0 : i32
    return %arg1, %c0_i32 : i32, i32
  }
  func.func @transform_2(%arg0: i32, %arg1: i32) -> (i32, i32) {
    %c0_i32 = arith.constant 0 : i32
    %c0_i32_0 = arith.constant 0 : i32
    %c0_i32_1 = arith.constant 0 : i32
    return %c0_i32, %c0_i32_0 : i32, i32
  }
  func.func @transform_3(%arg0: i32, %arg1: i32) -> (i32, i32) {
    %c0_i32 = arith.constant 0 : i32
    %c0_i32_0 = arith.constant 0 : i32
    %c0_i32_1 = arith.constant 0 : i32
    return %c0_i32, %c0_i32_0 : i32, i32
  }
  func.func @transform_4(%arg0: i32, %arg1: i32) -> (i32, i32) {
    %c0_i32 = arith.constant 0 : i32
    %c0_i32_0 = arith.constant 0 : i32
    %c0_i32_1 = arith.constant 0 : i32
    return %c0_i32, %c0_i32_0 : i32, i32
  }
  func.func @transform_5(%arg0: i32, %arg1: i32) -> (i32, i32) {
    %c0_i32 = arith.constant 0 : i32
    %c0_i32_0 = arith.constant 0 : i32
    %c0_i32_1 = arith.constant 0 : i32
    return %c0_i32, %c0_i32_0 : i32, i32
  }
  func.func @transform_6(%arg0: i32, %arg1: i32) -> (i32, i32) {
    %c0_i32 = arith.constant 0 : i32
    %c0_i32_0 = arith.constant 0 : i32
    %c0_i32_1 = arith.constant 0 : i32
    return %c0_i32, %c0_i32_0 : i32, i32
  }
  func.func @transform_7(%arg0: i32, %arg1: i32) -> (i32, i32) {
    %c0_i32 = arith.constant 0 : i32
    %c0_i32_0 = arith.constant 0 : i32
    return %arg0, %c0_i32 : i32, i32
  }
}

</mosaic_0001>

<llo_original>
// kernel: tpu_custom_call.1
$region0: #{tpu_custom_call.1}
  #allocation0 [shape = 'u32[]', space=smem, size = 0x4, offset = 0x4, fixed_abs, tag = 'smem constant byte address 0x4 - core index']
  #allocation1 [shape = 'u32[144,128]{1,0:T(1,128)}', space=vmem, size = 0x12000, scoped, tag = 'internal scratch']
  #allocation2 [shape = 'f32[8,128]{1,0:T(8,128)}', space=vmem, size = 0x1000, scoped, tag = 'scratch operand']
  %s0 = inlined_call_operand.hbm [shape: bf16[8,32], index: 0, kind: input, shape index: {}]
  %s1 = inlined_call_operand.hbm [shape: bf16[32,128], index: 1, kind: input, shape index: {}]
  %s2 = inlined_call_operand.vmem [shape: f32[1,128], index: 2, kind: input, shape index: {}]
  %s3 = inlined_call_operand.hbm [shape: f32[128,128], index: 3, kind: input, shape index: {}]
  %s4 = inlined_call_operand.vmem [shape: f32[1,128], index: 4, kind: input, shape index: {}]
  %s5 = inlined_call_operand.hbm [shape: f32[128,128], index: 5, kind: input, shape index: {}]
  %s6 = inlined_call_operand.vmem [shape: f32[1,128], index: 6, kind: input, shape index: {}]
  %s7 = inlined_call_operand.hbm [shape: f32[8,128], index: 7, kind: output, shape index: {}]
  %s8 = sld [smem:[#allocation0]]
  $region62: #{tpu_custom_call.1} parent=0
    _
  %s10 = ssub.s32 1, %s8
  %s11 = scalar_select 0, %s10, %s8
  $region1: #{tpu_custom_call.1} parent=0
    #allocation3 [shape = 'u8[2048]{0}', space=vmem, size = 0x800, scoped, tag = 'input window, operand 0, single buffered']
    #allocation4 [shape = 's32[1]{0}', space=sflag, size = 0x4, scoped, tag = 'scoped memory for tpu_custom_call.1']
    #allocation5 [shape = 's32[1]{0}', space=sflag, size = 0x4, scoped, tag = 'scoped memory for tpu_custom_call.1']
    #allocation6 [shape = 'u8[8192]{0}', space=vmem, size = 0x2000, scoped, tag = 'input window, operand 1, single buffered']
    #allocation7 [shape = 's32[1]{0}', space=sflag, size = 0x4, scoped, tag = 'scoped memory for tpu_custom_call.1']
    #allocation8 [shape = 'u8[65536]{0}', space=vmem, size = 0x10000, scoped, tag = 'input window, operand 3, single buffered']
    #allocation9 [shape = 'u8[65536]{0}', space=vmem, size = 0x10000, scoped, tag = 'input window, operand 5, single buffered']
    #allocation10 [shape = 's32[1]{0}', space=sflag, size = 0x4, scoped, tag = 'scoped memory for tpu_custom_call.1']
    #allocation11 [shape = 'u8[4096]{0}', space=vmem, size = 0x1000, scoped, tag = 'output window, operand 0, single buffered']
    %12 = vsyncpa [#allocation4], 0
    %13 = vsyncpa [#allocation7], 0
    %14 = vsyncpa [#allocation10], 0
    %15 = vsyncpa [#allocation5], 0
    // Predicated region
    $region2: #{tpu_custom_call.1} parent=1 // pred_check
      _
    $region3: #{tpu_custom_call.1} parent=1 // pred_check_branch
      %17 = sbr.rel (0) target = $region5
    $region4: #{tpu_custom_call.1} parent=1 // pred_region
      %s19 = ssub.s32 64, 64
      %20 = vsyncadd [#allocation4], %s19
      %s22 = sshll.u32 [#allocation3], 4
      %s23 = int_to_ptr.vmem [resolvable:$true] %s22
      %25 = dma.hbm_to_vmem [thread:$0]  %s0, 64, %s23, [#allocation4]
    $region5: #{tpu_custom_call.1} parent=1 // pred_fallthru
      _
    // Predicated region
    $region6: #{tpu_custom_call.1} parent=1 // pred_check
      _
    $region7: #{tpu_custom_call.1} parent=1 // pred_check_branch
      %27 = sbr.rel (0) target = $region9
    $region8: #{tpu_custom_call.1} parent=1 // pred_region
      %s29 = ssub.s32 256, 256
      %30 = vsyncadd [#allocation7], %s29
      %s31 = sshll.u32 [#allocation6], 4
      %s32 = int_to_ptr.vmem [resolvable:$true] %s31
      %37 = dma.hbm_to_vmem [thread:$0]  %s1, 256, %s32, [#allocation7], 64, 64, 4
    $region9: #{tpu_custom_call.1} parent=1 // pred_fallthru
      _
    // Predicated region
    $region10: #{tpu_custom_call.1} parent=1 // pred_check
      _
    $region11: #{tpu_custom_call.1} parent=1 // pred_check_branch
      %39 = sbr.rel (0) target = $region13
    $region12: #{tpu_custom_call.1} parent=1 // pred_region
      _
    $region13: #{tpu_custom_call.1} parent=1 // pred_fallthru
      _
    // Predicated region
    $region14: #{tpu_custom_call.1} parent=1 // pred_check
      _
    $region15: #{tpu_custom_call.1} parent=1 // pred_check_branch
      %41 = sbr.rel (0) target = $region17
    $region16: #{tpu_custom_call.1} parent=1 // pred_region
      %s43 = ssub.s32 2048, 2048
      %44 = vsyncadd [#allocation7], %s43
      %s45 = sshll.u32 [#allocation8], 4
      %s46 = int_to_ptr.vmem [resolvable:$true] %s45
      %51 = dma.hbm_to_vmem [thread:$0]  %s3, 2048, %s46, [#allocation7], 128, 128, 8
    $region17: #{tpu_custom_call.1} parent=1 // pred_fallthru
      _
    // Predicated region
    $region18: #{tpu_custom_call.1} parent=1 // pred_check
      _
    $region19: #{tpu_custom_call.1} parent=1 // pred_check_branch
      %53 = sbr.rel (0) target = $region21
    $region20: #{tpu_custom_call.1} parent=1 // pred_region
      _
    $region21: #{tpu_custom_call.1} parent=1 // pred_fallthru
      _
    // Predicated region
    $region22: #{tpu_custom_call.1} parent=1 // pred_check
      _
    $region23: #{tpu_custom_call.1} parent=1 // pred_check_branch
      %55 = sbr.rel (0) target = $region25
    $region24: #{tpu_custom_call.1} parent=1 // pred_region
      %s57 = ssub.s32 2048, 2048
      %58 = vsyncadd [#allocation10], %s57
      %s59 = sshll.u32 [#allocation9], 4
      %s60 = int_to_ptr.vmem [resolvable:$true] %s59
      %65 = dma.hbm_to_vmem [thread:$0]  %s5, 2048, %s60, [#allocation10], 128, 128, 8
    $region25: #{tpu_custom_call.1} parent=1 // pred_fallthru
      _
    // Predicated region
    $region26: #{tpu_custom_call.1} parent=1 // pred_check
      _
    $region27: #{tpu_custom_call.1} parent=1 // pred_check_branch
      %67 = sbr.rel (0) target = $region29
    $region28: #{tpu_custom_call.1} parent=1 // pred_region
      _
    $region29: #{tpu_custom_call.1} parent=1 // pred_fallthru
      _
    // Predicated region
    $region30: #{tpu_custom_call.1} parent=1 // pred_check
      _
    $region31: #{tpu_custom_call.1} parent=1 // pred_check_branch
      %69 = sbr.rel (0) target = $region33
    $region32: #{tpu_custom_call.1} parent=1 // pred_region
      %70 = dma.done [#allocation4], 64
    $region33: #{tpu_custom_call.1} parent=1 // pred_fallthru
      _
    // Predicated region
    $region34: #{tpu_custom_call.1} parent=1 // pred_check
      _
    $region35: #{tpu_custom_call.1} parent=1 // pred_check_branch
      %72 = sbr.rel (0) target = $region37
    $region36: #{tpu_custom_call.1} parent=1 // pred_region
      %73 = dma.done [#allocation7], 256
    $region37: #{tpu_custom_call.1} parent=1 // pred_fallthru
      _
    // Predicated region
    $region38: #{tpu_custom_call.1} parent=1 // pred_check
      _
    $region39: #{tpu_custom_call.1} parent=1 // pred_check_branch
      %75 = sbr.rel (0) target = $region41
    $region40: #{tpu_custom_call.1} parent=1 // pred_region
      %76 = dma.done [#allocation7], 2048
    $region41: #{tpu_custom_call.1} parent=1 // pred_fallthru
      _
    // Predicated region
    $region42: #{tpu_custom_call.1} parent=1 // pred_check
      _
    $region43: #{tpu_custom_call.1} parent=1 // pred_check_branch
      %78 = sbr.rel (0) target = $region45
    $region44: #{tpu_custom_call.1} parent=1 // pred_region
      %79 = dma.done [#allocation10], 2048
    $region45: #{tpu_custom_call.1} parent=1 // pred_fallthru
      _
    %p81 = scmp.eq.s32.totalorder 0, 0
    // Predicated region
    $region46: #{tpu_custom_call.1} parent=1 // pred_check
      %p82 = pneg %p81
    $region47: #{tpu_custom_call.1} parent=1 // pred_check_branch
      %84 = sbr.rel (%p82) target = $region49
    $region48: #{tpu_custom_call.1} parent=1 // pred_region
      %85 = vst [vmem:[#allocation2] sm:$0xff] 0.0
    $region49: #{tpu_custom_call.1} parent=1 // pred_fallthru
      _
    %v86 = vld [vmem:[#allocation2] sm:$0xff]
    %v87 = vld [vmem:[#allocation3] sm:$0xf]
    %v88 = vld [vmem:[#allocation6] sm:$0xf]
    %v89 = vld [vmem:[#allocation6 + $0x4] sm:$0xf]
    %v90 = vld [vmem:[#allocation6 + $0x8] sm:$0xf]
    %v91 = vld [vmem:[#allocation6 + $0xc] sm:$0xf]
    %v96 = vunpack.c.l.b16 %v88
    %v97 = vunpack.c.l.b16 %v89
    %v98 = vunpack.c.l.b16 %v90
    %v99 = vunpack.c.l.b16 %v91
    %v100 = vpack.c.b16 %v97, %v96
    %v101 = vpack.c.b16 %v99, %v98
    %vm104 = vcmask 261120
    %v106 = vsel %vm104, %v87, 0
    %108 = vmatprep.subr.bf16.mxu0 0
    %109 = vmatpush1.bf16.msra.mxu0 0
    %110 = vmatprep.subr.bf16.mxu0 0
    %111 = vmatpush1.bf16.msra.mxu0 0
    %112 = vmatprep.subr.bf16.mxu0 0
    %113 = vmatpush1.bf16.msra.mxu0 0
    %114 = vmatprep.subr.bf16.mxu0 0
    %115 = vmatpush1.bf16.msra.mxu0 0
    %116 = vmatprep.subr.bf16.mxu0 0
    %117 = vmatpush1.bf16.msra.mxu0 0
    %118 = vmatprep.subr.bf16.mxu0 0
    %119 = vmatpush1.bf16.msra.mxu0 0
    %120 = vmatprep.subr.bf16.mxu0 0
    %121 = vmatpush1.bf16.msra.mxu0 %v101
    %122 = vmatprep.subr.bf16.mxu0 0
    %123 = vmatpush1.bf16.msra.mxu0 %v100
    %124 = vmatprep.subr.bf16.mxu0 0
    %125 = vmatpush2.bf16.msra.mxu0 0
    %126 = vmatprep.subr.bf16.mxu0 0
    %127 = vmatpush2.bf16.msra.mxu0 0
    %128 = vmatprep.subr.bf16.mxu0 0
    %129 = vmatpush2.bf16.msra.mxu0 0
    %130 = vmatprep.subr.bf16.mxu0 0
    %131 = vmatpush2.bf16.msra.mxu0 0
    %132 = vmatprep.subr.bf16.mxu0 0
    %133 = vmatpush2.bf16.msra.mxu0 0
    %134 = vmatprep.subr.bf16.mxu0 0
    %135 = vmatpush2.bf16.msra.mxu0 0
    %136 = vmatprep.subr.bf16.mxu0 0
    %137 = vmatpush2.bf16.msra.mxu0 0
    %138 = vmatprep.subr.bf16.mxu0 0
    %139 = vmatpush2.bf16.msra.mxu0 0
    %140 = vmatprep.mubr.bf16.mxu0 0
    %141 = vmatmul.mubr.bf16.gmra.mxu0 %v106
    %v142 = vpop.f32.mrf.mxu0
    %v143 = vadd.f32 0.0, %v142
    %v144 = vpop.f32.mrf.mxu0
    %v145 = vpop.f32.mrf.mxu0
    %v146 = vpop.f32.mrf.mxu0
    %147 = vdwg.mxu0
    %v148 = vadd.f32 %v86, %v143
    %149 = vst [vmem:[#allocation2] sm:$0xff] %v148
    // Predicated region
    $region50: #{tpu_custom_call.1} parent=1 // pred_check
      %p150 = pneg %p81
    $region51: #{tpu_custom_call.1} parent=1 // pred_check_branch
      %152 = sbr.rel (%p150) target = $region53
    $region52: #{tpu_custom_call.1} parent=1 // pred_region
      %v153 = vld [vmem:[#allocation2] sm:$0xff]
      %v154 = vld [vmem:[%s2] sm:$0x1]
      %v156 = vlaneseq
      %v157 = vshrl.u32 %v156, 7
      %v158 = vsub.s32 0, %v157
      %v159 = vrot.slane %v154, %v158
      %v161 = vadd.f32 %v153, %v159
      %v162 = vmax.f32 %v161, 0.0
      %v163 = vld [vmem:[#allocation8] sm:$0xff]
      %v164 = vld [vmem:[#allocation8 + $0x8] sm:$0xff]
      %v165 = vld [vmem:[#allocation8 + $0x10] sm:$0xff]
      %v166 = vld [vmem:[#allocation8 + $0x18] sm:$0xff]
      %v167 = vld [vmem:[#allocation8 + $0x20] sm:$0xff]
      %v168 = vld [vmem:[#allocation8 + $0x28] sm:$0xff]
      %v169 = vld [vmem:[#allocation8 + $0x30] sm:$0xff]
      %v170 = vld [vmem:[#allocation8 + $0x38] sm:$0xff]
      %v171 = vld [vmem:[#allocation8 + $0x40] sm:$0xff]
      %v172 = vld [vmem:[#allocation8 + $0x48] sm:$0xff]
      %v173 = vld [vmem:[#allocation8 + $0x50] sm:$0xff]
      %v174 = vld [vmem:[#allocation8 + $0x58] sm:$0xff]
      %v175 = vld [vmem:[#allocation8 + $0x60] sm:$0xff]
      %v176 = vld [vmem:[#allocation8 + $0x68] sm:$0xff]
      %v177 = vld [vmem:[#allocation8 + $0x70] sm:$0xff]
      %v178 = vld [vmem:[#allocation8 + $0x78] sm:$0xff]
      %v179 = vld [vmem:[%s4] sm:$0x1]
      %v181 = vlaneseq
      %v182 = vshrl.u32 %v181, 7
      %v183 = vsub.s32 0, %v182
      %v184 = vrot.slane %v179, %v183
      %186 = vmatprep.subr.mxu0 0.0
      %187 = vmatpush1.msra.mxu0 %v178
      %188 = vmatprep.subr.mxu0 0.0
      %189 = vmatpush1.msra.mxu0 %v177
      %190 = vmatprep.subr.mxu0 0.0
      %191 = vmatpush1.msra.mxu0 %v176
      %192 = vmatprep.subr.mxu0 0.0
      %193 = vmatpush1.msra.mxu0 %v175
      %194 = vmatprep.subr.mxu0 0.0
      %195 = vmatpush1.msra.mxu0 %v174
      %196 = vmatprep.subr.mxu0 0.0
      %197 = vmatpush1.msra.mxu0 %v173
      %198 = vmatprep.subr.mxu0 0.0
      %199 = vmatpush1.msra.mxu0 %v172
      %200 = vmatprep.subr.mxu0 0.0
      %201 = vmatpush1.msra.mxu0 %v171
      %202 = vmatprep.subr.mxu0 0.0
      %203 = vmatpush1.msra.mxu0 %v170
      %204 = vmatprep.subr.mxu0 0.0
      %205 = vmatpush1.msra.mxu0 %v169
      %206 = vmatprep.subr.mxu0 0.0
      %207 = vmatpush1.msra.mxu0 %v168
      %208 = vmatprep.subr.mxu0 0.0
      %209 = vmatpush1.msra.mxu0 %v167
      %210 = vmatprep.subr.mxu0 0.0
      %211 = vmatpush1.msra.mxu0 %v166
      %212 = vmatprep.subr.mxu0 0.0
      %213 = vmatpush1.msra.mxu0 %v165
      %214 = vmatprep.subr.mxu0 0.0
      %215 = vmatpush1.msra.mxu0 %v164
      %216 = vmatprep.subr.mxu0 0.0
      %217 = vmatpush1.msra.mxu0 %v163
      %218 = vmatprep.subr.mxu0 0.0
      %219 = vmatpush2.msra.mxu0 0.0
      %220 = vmatprep.subr.mxu0 0.0
      %221 = vmatpush2.msra.mxu0 0.0
      %222 = vmatprep.subr.mxu0 0.0
      %223 = vmatpush2.msra.mxu0 0.0
      %224 = vmatprep.subr.mxu0 0.0
      %225 = vmatpush2.msra.mxu0 0.0
      %226 = vmatprep.subr.mxu0 0.0
      %227 = vmatpush2.msra.mxu0 0.0
      %228 = vmatprep.subr.mxu0 0.0
      %229 = vmatpush2.msra.mxu0 0.0
      %230 = vmatprep.subr.mxu0 0.0
      %231 = vmatpush2.msra.mxu0 0.0
      %232 = vmatprep.subr.mxu0 0.0
      %233 = vmatpush2.msra.mxu0 0.0
      %234 = vmatprep.subr.mxu0 0.0
      %235 = vmatpush2.msra.mxu0 0.0
      %236 = vmatprep.subr.mxu0 0.0
      %237 = vmatpush2.msra.mxu0 0.0
      %238 = vmatprep.subr.mxu0 0.0
      %239 = vmatpush2.msra.mxu0 0.0
      %240 = vmatprep.subr.mxu0 0.0
      %241 = vmatpush2.msra.mxu0 0.0
      %242 = vmatprep.subr.mxu0 0.0
      %243 = vmatpush2.msra.mxu0 0.0
      %244 = vmatprep.subr.mxu0 0.0
      %245 = vmatpush2.msra.mxu0 0.0
      %246 = vmatprep.subr.mxu0 0.0
      %247 = vmatpush2.msra.mxu0 0.0
      %248 = vmatprep.subr.mxu0 0.0
      %249 = vmatpush2.msra.mxu0 0.0
      %250 = vmatprep.mubr.f32.mxu0 0.0
      %251 = vmatmul.mubr.f32.gmra.mxu0 %v162
      %v252 = vpop.f32.mrf.mxu0
      %v253 = vadd.f32 %v184, %v252
      %v254 = vpop.f32.mrf.mxu0
      %255 = vdwg.mxu0
      %v256 = vld [vmem:[#allocation9] sm:$0xff]
      %v257 = vld [vmem:[#allocation9 + $0x8] sm:$0xff]
      %v258 = vld [vmem:[#allocation9 + $0x10] sm:$0xff]
      %v259 = vld [vmem:[#allocation9 + $0x18] sm:$0xff]
      %v260 = vld [vmem:[#allocation9 + $0x20] sm:$0xff]
      %v261 = vld [vmem:[#allocation9 + $0x28] sm:$0xff]
      %v262 = vld [vmem:[#allocation9 + $0x30] sm:$0xff]
      %v263 = vld [vmem:[#allocation9 + $0x38] sm:$0xff]
      %v264 = vld [vmem:[#allocation9 + $0x40] sm:$0xff]
      %v265 = vld [vmem:[#allocation9 + $0x48] sm:$0xff]
      %v266 = vld [vmem:[#allocation9 + $0x50] sm:$0xff]
      %v267 = vld [vmem:[#allocation9 + $0x58] sm:$0xff]
      %v268 = vld [vmem:[#allocation9 + $0x60] sm:$0xff]
      %v269 = vld [vmem:[#allocation9 + $0x68] sm:$0xff]
      %v270 = vld [vmem:[#allocation9 + $0x70] sm:$0xff]
      %v271 = vld [vmem:[#allocation9 + $0x78] sm:$0xff]
      %v272 = vld [vmem:[%s6] sm:$0x1]
      %v274 = vlaneseq
      %v275 = vshrl.u32 %v274, 7
      %v276 = vsub.s32 0, %v275
      %v277 = vrot.slane %v272, %v276
      %279 = vmatprep.subr.mxu0 0.0
      %280 = vmatpush1.msra.mxu0 %v271
      %281 = vmatprep.subr.mxu0 0.0
      %282 = vmatpush1.msra.mxu0 %v270
      %283 = vmatprep.subr.mxu0 0.0
      %284 = vmatpush1.msra.mxu0 %v269
      %285 = vmatprep.subr.mxu0 0.0
      %286 = vmatpush1.msra.mxu0 %v268
      %287 = vmatprep.subr.mxu0 0.0
      %288 = vmatpush1.msra.mxu0 %v267
      %289 = vmatprep.subr.mxu0 0.0
      %290 = vmatpush1.msra.mxu0 %v266
      %291 = vmatprep.subr.mxu0 0.0
      %292 = vmatpush1.msra.mxu0 %v265
      %293 = vmatprep.subr.mxu0 0.0
      %294 = vmatpush1.msra.mxu0 %v264
      %295 = vmatprep.subr.mxu0 0.0
      %296 = vmatpush1.msra.mxu0 %v263
      %297 = vmatprep.subr.mxu0 0.0
      %298 = vmatpush1.msra.mxu0 %v262
      %299 = vmatprep.subr.mxu0 0.0
      %300 = vmatpush1.msra.mxu0 %v261
      %301 = vmatprep.subr.mxu0 0.0
      %302 = vmatpush1.msra.mxu0 %v260
      %303 = vmatprep.subr.mxu0 0.0
      %304 = vmatpush1.msra.mxu0 %v259
      %305 = vmatprep.subr.mxu0 0.0
      %306 = vmatpush1.msra.mxu0 %v258
      %307 = vmatprep.subr.mxu0 0.0
      %308 = vmatpush1.msra.mxu0 %v257
      %309 = vmatprep.subr.mxu0 0.0
      %310 = vmatpush1.msra.mxu0 %v256
      %311 = vmatprep.subr.mxu0 0.0
      %312 = vmatpush2.msra.mxu0 0.0
      %313 = vmatprep.subr.mxu0 0.0
      %314 = vmatpush2.msra.mxu0 0.0
      %315 = vmatprep.subr.mxu0 0.0
      %316 = vmatpush2.msra.mxu0 0.0
      %317 = vmatprep.subr.mxu0 0.0
      %318 = vmatpush2.msra.mxu0 0.0
      %319 = vmatprep.subr.mxu0 0.0
      %320 = vmatpush2.msra.mxu0 0.0
      %321 = vmatprep.subr.mxu0 0.0
      %322 = vmatpush2.msra.mxu0 0.0
      %323 = vmatprep.subr.mxu0 0.0
      %324 = vmatpush2.msra.mxu0 0.0
      %325 = vmatprep.subr.mxu0 0.0
      %326 = vmatpush2.msra.mxu0 0.0
      %327 = vmatprep.subr.mxu0 0.0
      %328 = vmatpush2.msra.mxu0 0.0
      %329 = vmatprep.subr.mxu0 0.0
      %330 = vmatpush2.msra.mxu0 0.0
      %331 = vmatprep.subr.mxu0 0.0
      %332 = vmatpush2.msra.mxu0 0.0
      %333 = vmatprep.subr.mxu0 0.0
      %334 = vmatpush2.msra.mxu0 0.0
      %335 = vmatprep.subr.mxu0 0.0
      %336 = vmatpush2.msra.mxu0 0.0
      %337 = vmatprep.subr.mxu0 0.0
      %338 = vmatpush2.msra.mxu0 0.0
      %339 = vmatprep.subr.mxu0 0.0
      %340 = vmatpush2.msra.mxu0 0.0
      %341 = vmatprep.subr.mxu0 0.0
      %342 = vmatpush2.msra.mxu0 0.0
      %343 = vmatprep.mubr.f32.mxu0 0.0
      %344 = vmatmul.mubr.f32.gmra.mxu0 %v253
      %v345 = vpop.f32.mrf.mxu0
      %v346 = vadd.f32 %v277, %v345
      %v347 = vpop.f32.mrf.mxu0
      %348 = vdwg.mxu0
      %349 = vmax.xlane.f32.xlu0 %v346
      %v350 = vpop.xlane.xlu0 %349
      %v351 = vsub.f32 %v346, %v350
      %v352 = vmul.f32 %v351, 1.442695
      %v353 = vpow.pop %v352
      %354 = vadd.xlane.f32.xlu0 %v353
      %v355 = vpop.xlane.xlu0 %354
      %v356 = vrcp.pop %v355
      %v357 = vmul.f32 %v353, %v356
      %358 = vst [vmem:[#allocation11] sm:$0xff] %v357
    $region53: #{tpu_custom_call.1} parent=1 // pred_fallthru
      _
    // Predicated region
    $region54: #{tpu_custom_call.1} parent=1 // pred_check
      _
    $region55: #{tpu_custom_call.1} parent=1 // pred_check_branch
      %360 = sbr.rel (0) target = $region57
    $region56: #{tpu_custom_call.1} parent=1 // pred_region
      %s362 = ssub.s32 128, 128
      %363 = vsyncadd [#allocation5], %s362
      %s365 = sshll.u32 [#allocation11], 4
      %s366 = int_to_ptr.vmem [resolvable:$true] %s365
      %368 = dma.vmem_to_hbm [thread:$0]  %s366, 128, %s7, [#allocation5]
    $region57: #{tpu_custom_call.1} parent=1 // pred_fallthru
      _
    // Predicated region
    $region58: #{tpu_custom_call.1} parent=1 // pred_check
      _
    $region59: #{tpu_custom_call.1} parent=1 // pred_check_branch
      %370 = sbr.rel (0) target = $region61
    $region60: #{tpu_custom_call.1} parent=1 // pred_region
      %371 = dma.done [#allocation5], 128
    $region61: #{tpu_custom_call.1} parent=1 // pred_fallthru
      _
    %372 = vsyncpa [#allocation4], 1
    %373 = vsyncpa [#allocation7], 1
    %374 = vsyncpa [#allocation10], 1
    %375 = vsyncpa [#allocation5], 1

// kernel: tpu_custom_call.1
$region0: #{tpu_custom_call.1}
  #allocation0 [shape = 'u32[]', space=smem, size = 0x4, offset = 0x4, fixed_abs, tag = 'smem constant byte address 0x4 - core index']
  #allocation1 [shape = 'u32[144,128]{1,0:T(1,128)}', space=vmem, size = 0x12000, scoped, tag = 'internal scratch']
  #allocation2 [shape = 'f32[8,128]{1,0:T(8,128)}', space=vmem, size = 0x1000, scoped, tag = 'scratch operand']
  %s0 = inlined_call_operand.hbm [shape: bf16[8,32], index: 0, kind: input, shape index: {}]
  %s1 = inlined_call_operand.hbm [shape: bf16[32,128], index: 1, kind: input, shape index: {}]
  %s2 = inlined_call_operand.vmem [shape: f32[1,128], index: 2, kind: input, shape index: {}]
  %s3 = inlined_call_operand.hbm [shape: f32[128,128], index: 3, kind: input, shape index: {}]
  %s4 = inlined_call_operand.vmem [shape: f32[1,128], index: 4, kind: input, shape index: {}]
  %s5 = inlined_call_operand.hbm [shape: f32[128,128], index: 5, kind: input, shape index: {}]
  %s6 = inlined_call_operand.vmem [shape: f32[1,128], index: 6, kind: input, shape index: {}]
  %s7 = inlined_call_operand.hbm [shape: f32[8,128], index: 7, kind: output, shape index: {}]
  %s8 = sld [smem:[#allocation0]]
  $region62: #{tpu_custom_call.1} parent=0
    _
  %s10 = ssub.s32 1, %s8
  %s11 = scalar_select 0, %s10, %s8
  $region1: #{tpu_custom_call.1} parent=0
    #allocation3 [shape = 'u8[2048]{0}', space=vmem, size = 0x800, scoped, tag = 'input window, operand 0, single buffered']
    #allocation4 [shape = 's32[1]{0}', space=sflag, size = 0x4, scoped, tag = 'scoped memory for tpu_custom_call.1']
    #allocation5 [shape = 's32[1]{0}', space=sflag, size = 0x4, scoped, tag = 'scoped memory for tpu_custom_call.1']
    #allocation6 [shape = 'u8[8192]{0}', space=vmem, size = 0x2000, scoped, tag = 'input window, operand 1, single buffered']
    #allocation7 [shape = 's32[1]{0}', space=sflag, size = 0x4, scoped, tag = 'scoped memory for tpu_custom_call.1']
    #allocation8 [shape = 'u8[65536]{0}', space=vmem, size = 0x10000, scoped, tag = 'input window, operand 3, single buffered']
    #allocation9 [shape = 'u8[65536]{0}', space=vmem, size = 0x10000, scoped, tag = 'input window, operand 5, single buffered']
    #allocation10 [shape = 's32[1]{0}', space=sflag, size = 0x4, scoped, tag = 'scoped memory for tpu_custom_call.1']
    #allocation11 [shape = 'u8[4096]{0}', space=vmem, size = 0x1000, scoped, tag = 'output window, operand 0, single buffered']
    %12 = vsyncpa [#allocation4], 0
    %13 = vsyncpa [#allocation7], 0
    %14 = vsyncpa [#allocation10], 0
    %15 = vsyncpa [#allocation5], 0
    // Predicated region
    $region2: #{tpu_custom_call.1} parent=1 // pred_check
      _
    $region3: #{tpu_custom_call.1} parent=1 // pred_check_branch
      %17 = sbr.rel (0) target = $region5
    $region4: #{tpu_custom_call.1} parent=1 // pred_region
      %s19 = ssub.s32 64, 64
      %20 = vsyncadd [#allocation4], %s19
      %s22 = sshll.u32 [#allocation3], 4
      %s23 = int_to_ptr.vmem [resolvable:$true] %s22
      %25 = dma.hbm_to_vmem [thread:$0]  %s0, 64, %s23, [#allocation4]
    $region5: #{tpu_custom_call.1} parent=1 // pred_fallthru
      _
    // Predicated region
    $region6: #{tpu_custom_call.1} parent=1 // pred_check
      _
    $region7: #{tpu_custom_call.1} parent=1 // pred_check_branch
      %27 = sbr.rel (0) target = $region9
    $region8: #{tpu_custom_call.1} parent=1 // pred_region
      %s29 = ssub.s32 256, 256
      %30 = vsyncadd [#allocation7], %s29
      %s31 = sshll.u32 [#allocation6], 4
      %s32 = int_to_ptr.vmem [resolvable:$true] %s31
      %37 = dma.hbm_to_vmem [thread:$0]  %s1, 256, %s32, [#allocation7], 64, 64, 4
    $region9: #{tpu_custom_call.1} parent=1 // pred_fallthru
      _
    // Predicated region
    $region10: #{tpu_custom_call.1} parent=1 // pred_check
      _
    $region11: #{tpu_custom_call.1} parent=1 // pred_check_branch
      %39 = sbr.rel (0) target = $region13
    $region12: #{tpu_custom_call.1} parent=1 // pred_region
      _
    $region13: #{tpu_custom_call.1} parent=1 // pred_fallthru
      _
    // Predicated region
    $region14: #{tpu_custom_call.1} parent=1 // pred_check
      _
    $region15: #{tpu_custom_call.1} parent=1 // pred_check_branch
      %41 = sbr.rel (0) target = $region17
    $region16: #{tpu_custom_call.1} parent=1 // pred_region
      %s43 = ssub.s32 2048, 2048
      %44 = vsyncadd [#allocation7], %s43
      %s45 = sshll.u32 [#allocation8], 4
      %s46 = int_to_ptr.vmem [resolvable:$true] %s45
      %51 = dma.hbm_to_vmem [thread:$0]  %s3, 2048, %s46, [#allocation7], 128, 128, 8
    $region17: #{tpu_custom_call.1} parent=1 // pred_fallthru
      _
    // Predicated region
    $region18: #{tpu_custom_call.1} parent=1 // pred_check
      _
    $region19: #{tpu_custom_call.1} parent=1 // pred_check_branch
      %53 = sbr.rel (0) target = $region21
    $region20: #{tpu_custom_call.1} parent=1 // pred_region
      _
    $region21: #{tpu_custom_call.1} parent=1 // pred_fallthru
      _
    // Predicated region
    $region22: #{tpu_custom_call.1} parent=1 // pred_check
      _
    $region23: #{tpu_custom_call.1} parent=1 // pred_check_branch
      %55 = sbr.rel (0) target = $region25
    $region24: #{tpu_custom_call.1} parent=1 // pred_region
      %s57 = ssub.s32 2048, 2048
      %58 = vsyncadd [#allocation10], %s57
      %s59 = sshll.u32 [#allocation9], 4
      %s60 = int_to_ptr.vmem [resolvable:$true] %s59
      %65 = dma.hbm_to_vmem [thread:$0]  %s5, 2048, %s60, [#allocation10], 128, 128, 8
    $region25: #{tpu_custom_call.1} parent=1 // pred_fallthru
      _
    // Predicated region
    $region26: #{tpu_custom_call.1} parent=1 // pred_check
      _
    $region27: #{tpu_custom_call.1} parent=1 // pred_check_branch
      %67 = sbr.rel (0) target = $region29
    $region28: #{tpu_custom_call.1} parent=1 // pred_region
      _
    $region29: #{tpu_custom_call.1} parent=1 // pred_fallthru
      _
    // Predicated region
    $region30: #{tpu_custom_call.1} parent=1 // pred_check
      _
    $region31: #{tpu_custom_call.1} parent=1 // pred_check_branch
      %69 = sbr.rel (0) target = $region33
    $region32: #{tpu_custom_call.1} parent=1 // pred_region
      %70 = dma.done [#allocation4], 64
    $region33: #{tpu_custom_call.1} parent=1 // pred_fallthru
      _
    // Predicated region
    $region34: #{tpu_custom_call.1} parent=1 // pred_check
      _
    $region35: #{tpu_custom_call.1} parent=1 // pred_check_branch
      %72 = sbr.rel (0) target = $region37
    $region36: #{tpu_custom_call.1} parent=1 // pred_region
      %73 = dma.done [#allocation7], 256
    $region37: #{tpu_custom_call.1} parent=1 // pred_fallthru
      _
    // Predicated region
    $region38: #{tpu_custom_call.1} parent=1 // pred_check
      _
    $region39: #{tpu_custom_call.1} parent=1 // pred_check_branch
      %75 = sbr.rel (0) target = $region41
    $region40: #{tpu_custom_call.1} parent=1 // pred_region
      %76 = dma.done [#allocation7], 2048
    $region41: #{tpu_custom_call.1} parent=1 // pred_fallthru
      _
    // Predicated region
    $region42: #{tpu_custom_call.1} parent=1 // pred_check
      _
    $region43: #{tpu_custom_call.1} parent=1 // pred_check_branch
      %78 = sbr.rel (0) target = $region45
    $region44: #{tpu_custom_call.1} parent=1 // pred_region
      %79 = dma.done [#allocation10], 2048
    $region45: #{tpu_custom_call.1} parent=1 // pred_fallthru
      _
    %p81 = scmp.eq.s32.totalorder 0, 0
    // Predicated region
    $region46: #{tpu_custom_call.1} parent=1 // pred_check
      %p82 = pneg %p81
    $region47: #{tpu_custom_call.1} parent=1 // pred_check_branch
      %84 = sbr.rel (%p82) target = $region49
    $region48: #{tpu_custom_call.1} parent=1 // pred_region
      %85 = vst [vmem:[#allocation2] sm:$0xff] 0.0
    $region49: #{tpu_custom_call.1} parent=1 // pred_fallthru
      _
    %v86 = vld [vmem:[#allocation2] sm:$0xff]
    %v87 = vld [vmem:[#allocation3] sm:$0xf]
    %v88 = vld [vmem:[#allocation6] sm:$0xf]
    %v89 = vld [vmem:[#allocation6 + $0x4] sm:$0xf]
    %v90 = vld [vmem:[#allocation6 + $0x8] sm:$0xf]
    %v91 = vld [vmem:[#allocation6 + $0xc] sm:$0xf]
    %v96 = vunpack.c.l.b16 %v88
    %v97 = vunpack.c.l.b16 %v89
    %v98 = vunpack.c.l.b16 %v90
    %v99 = vunpack.c.l.b16 %v91
    %v100 = vpack.c.b16 %v97, %v96
    %v101 = vpack.c.b16 %v99, %v98
    %vm104 = vcmask 261120
    %v106 = vsel %vm104, %v87, 0
    %108 = vmatprep.subr.bf16.mxu0 0
    %109 = vmatpush1.bf16.msra.mxu0 0
    %110 = vmatprep.subr.bf16.mxu0 0
    %111 = vmatpush1.bf16.msra.mxu0 0
    %112 = vmatprep.subr.bf16.mxu0 0
    %113 = vmatpush1.bf16.msra.mxu0 0
    %114 = vmatprep.subr.bf16.mxu0 0
    %115 = vmatpush1.bf16.msra.mxu0 0
    %116 = vmatprep.subr.bf16.mxu0 0
    %117 = vmatpush1.bf16.msra.mxu0 0
    %118 = vmatprep.subr.bf16.mxu0 0
    %119 = vmatpush1.bf16.msra.mxu0 0
    %120 = vmatprep.subr.bf16.mxu0 0
    %121 = vmatpush1.bf16.msra.mxu0 %v101
    %122 = vmatprep.subr.bf16.mxu0 0
    %123 = vmatpush1.bf16.msra.mxu0 %v100
    %124 = vmatprep.subr.bf16.mxu0 0
    %125 = vmatpush2.bf16.msra.mxu0 0
    %126 = vmatprep.subr.bf16.mxu0 0
    %127 = vmatpush2.bf16.msra.mxu0 0
    %128 = vmatprep.subr.bf16.mxu0 0
    %129 = vmatpush2.bf16.msra.mxu0 0
    %130 = vmatprep.subr.bf16.mxu0 0
    %131 = vmatpush2.bf16.msra.mxu0 0
    %132 = vmatprep.subr.bf16.mxu0 0
    %133 = vmatpush2.bf16.msra.mxu0 0
    %134 = vmatprep.subr.bf16.mxu0 0
    %135 = vmatpush2.bf16.msra.mxu0 0
    %136 = vmatprep.subr.bf16.mxu0 0
    %137 = vmatpush2.bf16.msra.mxu0 0
    %138 = vmatprep.subr.bf16.mxu0 0
    %139 = vmatpush2.bf16.msra.mxu0 0
    %140 = vmatprep.mubr.bf16.mxu0 0
    %141 = vmatmul.mubr.bf16.gmra.mxu0 %v106
    %v142 = vpop.f32.mrf.mxu0
    %v143 = vadd.f32 0.0, %v142
    %v144 = vpop.f32.mrf.mxu0
    %v145 = vpop.f32.mrf.mxu0
    %v146 = vpop.f32.mrf.mxu0
    %147 = vdwg.mxu0
    %v148 = vadd.f32 %v86, %v143
    %149 = vst [vmem:[#allocation2] sm:$0xff] %v148
    // Predicated region
    $region50: #{tpu_custom_call.1} parent=1 // pred_check
      %p150 = pneg %p81
    $region51: #{tpu_custom_call.1} parent=1 // pred_check_branch
      %152 = sbr.rel (%p150) target = $region53
    $region52: #{tpu_custom_call.1} parent=1 // pred_region
      %v153 = vld [vmem:[#allocation2] sm:$0xff]
      %v154 = vld [vmem:[%s2] sm:$0x1]
      %v156 = vlaneseq
      %v157 = vshrl.u32 %v156, 7
      %v158 = vsub.s32 0, %v157
      %v159 = vrot.slane %v154, %v158
      %v161 = vadd.f32 %v153, %v159
      %v162 = vmax.f32 %v161, 0.0
      %v163 = vld [vmem:[#allocation8] sm:$0xff]
      %v164 = vld [vmem:[#allocation8 + $0x8] sm:$0xff]
      %v165 = vld [vmem:[#allocation8 + $0x10] sm:$0xff]
      %v166 = vld [vmem:[#allocation8 + $0x18] sm:$0xff]
      %v167 = vld [vmem:[#allocation8 + $0x20] sm:$0xff]
      %v168 = vld [vmem:[#allocation8 + $0x28] sm:$0xff]
      %v169 = vld [vmem:[#allocation8 + $0x30] sm:$0xff]
      %v170 = vld [vmem:[#allocation8 + $0x38] sm:$0xff]
      %v171 = vld [vmem:[#allocation8 + $0x40] sm:$0xff]
      %v172 = vld [vmem:[#allocation8 + $0x48] sm:$0xff]
      %v173 = vld [vmem:[#allocation8 + $0x50] sm:$0xff]
      %v174 = vld [vmem:[#allocation8 + $0x58] sm:$0xff]
      %v175 = vld [vmem:[#allocation8 + $0x60] sm:$0xff]
      %v176 = vld [vmem:[#allocation8 + $0x68] sm:$0xff]
      %v177 = vld [vmem:[#allocation8 + $0x70] sm:$0xff]
      %v178 = vld [vmem:[#allocation8 + $0x78] sm:$0xff]
      %v179 = vld [vmem:[%s4] sm:$0x1]
      %v181 = vlaneseq
      %v182 = vshrl.u32 %v181, 7
      %v183 = vsub.s32 0, %v182
      %v184 = vrot.slane %v179, %v183
      %186 = vmatprep.subr.mxu0 0.0
      %187 = vmatpush1.msra.mxu0 %v178
      %188 = vmatprep.subr.mxu0 0.0
      %189 = vmatpush1.msra.mxu0 %v177
      %190 = vmatprep.subr.mxu0 0.0
      %191 = vmatpush1.msra.mxu0 %v176
      %192 = vmatprep.subr.mxu0 0.0
      %193 = vmatpush1.msra.mxu0 %v175
      %194 = vmatprep.subr.mxu0 0.0
      %195 = vmatpush1.msra.mxu0 %v174
      %196 = vmatprep.subr.mxu0 0.0
      %197 = vmatpush1.msra.mxu0 %v173
      %198 = vmatprep.subr.mxu0 0.0
      %199 = vmatpush1.msra.mxu0 %v172
      %200 = vmatprep.subr.mxu0 0.0
      %201 = vmatpush1.msra.mxu0 %v171
      %202 = vmatprep.subr.mxu0 0.0
      %203 = vmatpush1.msra.mxu0 %v170
      %204 = vmatprep.subr.mxu0 0.0
      %205 = vmatpush1.msra.mxu0 %v169
      %206 = vmatprep.subr.mxu0 0.0
      %207 = vmatpush1.msra.mxu0 %v168
      %208 = vmatprep.subr.mxu0 0.0
      %209 = vmatpush1.msra.mxu0 %v167
      %210 = vmatprep.subr.mxu0 0.0
      %211 = vmatpush1.msra.mxu0 %v166
      %212 = vmatprep.subr.mxu0 0.0
      %213 = vmatpush1.msra.mxu0 %v165
      %214 = vmatprep.subr.mxu0 0.0
      %215 = vmatpush1.msra.mxu0 %v164
      %216 = vmatprep.subr.mxu0 0.0
      %217 = vmatpush1.msra.mxu0 %v163
      %218 = vmatprep.subr.mxu0 0.0
      %219 = vmatpush2.msra.mxu0 0.0
      %220 = vmatprep.subr.mxu0 0.0
      %221 = vmatpush2.msra.mxu0 0.0
      %222 = vmatprep.subr.mxu0 0.0
      %223 = vmatpush2.msra.mxu0 0.0
      %224 = vmatprep.subr.mxu0 0.0
      %225 = vmatpush2.msra.mxu0 0.0
      %226 = vmatprep.subr.mxu0 0.0
      %227 = vmatpush2.msra.mxu0 0.0
      %228 = vmatprep.subr.mxu0 0.0
      %229 = vmatpush2.msra.mxu0 0.0
      %230 = vmatprep.subr.mxu0 0.0
      %231 = vmatpush2.msra.mxu0 0.0
      %232 = vmatprep.subr.mxu0 0.0
      %233 = vmatpush2.msra.mxu0 0.0
      %234 = vmatprep.subr.mxu0 0.0
      %235 = vmatpush2.msra.mxu0 0.0
      %236 = vmatprep.subr.mxu0 0.0
      %237 = vmatpush2.msra.mxu0 0.0
      %238 = vmatprep.subr.mxu0 0.0
      %239 = vmatpush2.msra.mxu0 0.0
      %240 = vmatprep.subr.mxu0 0.0
      %241 = vmatpush2.msra.mxu0 0.0
      %242 = vmatprep.subr.mxu0 0.0
      %243 = vmatpush2.msra.mxu0 0.0
      %244 = vmatprep.subr.mxu0 0.0
      %245 = vmatpush2.msra.mxu0 0.0
      %246 = vmatprep.subr.mxu0 0.0
      %247 = vmatpush2.msra.mxu0 0.0
      %248 = vmatprep.subr.mxu0 0.0
      %249 = vmatpush2.msra.mxu0 0.0
      %250 = vmatprep.mubr.f32.mxu0 0.0
      %251 = vmatmul.mubr.f32.gmra.mxu0 %v162
      %v252 = vpop.f32.mrf.mxu0
      %v253 = vadd.f32 %v184, %v252
      %v254 = vpop.f32.mrf.mxu0
      %255 = vdwg.mxu0
      %v256 = vld [vmem:[#allocation9] sm:$0xff]
      %v257 = vld [vmem:[#allocation9 + $0x8] sm:$0xff]
      %v258 = vld [vmem:[#allocation9 + $0x10] sm:$0xff]
      %v259 = vld [vmem:[#allocation9 + $0x18] sm:$0xff]
      %v260 = vld [vmem:[#allocation9 + $0x20] sm:$0xff]
      %v261 = vld [vmem:[#allocation9 + $0x28] sm:$0xff]
      %v262 = vld [vmem:[#allocation9 + $0x30] sm:$0xff]
      %v263 = vld [vmem:[#allocation9 + $0x38] sm:$0xff]
      %v264 = vld [vmem:[#allocation9 + $0x40] sm:$0xff]
      %v265 = vld [vmem:[#allocation9 + $0x48] sm:$0xff]
      %v266 = vld [vmem:[#allocation9 + $0x50] sm:$0xff]
      %v267 = vld [vmem:[#allocation9 + $0x58] sm:$0xff]
      %v268 = vld [vmem:[#allocation9 + $0x60] sm:$0xff]
      %v269 = vld [vmem:[#allocation9 + $0x68] sm:$0xff]
      %v270 = vld [vmem:[#allocation9 + $0x70] sm:$0xff]
      %v271 = vld [vmem:[#allocation9 + $0x78] sm:$0xff]
      %v272 = vld [vmem:[%s6] sm:$0x1]
      %v274 = vlaneseq
      %v275 = vshrl.u32 %v274, 7
      %v276 = vsub.s32 0, %v275
      %v277 = vrot.slane %v272, %v276
      %279 = vmatprep.subr.mxu0 0.0
      %280 = vmatpush1.msra.mxu0 %v271
      %281 = vmatprep.subr.mxu0 0.0
      %282 = vmatpush1.msra.mxu0 %v270
      %283 = vmatprep.subr.mxu0 0.0
      %284 = vmatpush1.msra.mxu0 %v269
      %285 = vmatprep.subr.mxu0 0.0
      %286 = vmatpush1.msra.mxu0 %v268
      %287 = vmatprep.subr.mxu0 0.0
      %288 = vmatpush1.msra.mxu0 %v267
      %289 = vmatprep.subr.mxu0 0.0
      %290 = vmatpush1.msra.mxu0 %v266
      %291 = vmatprep.subr.mxu0 0.0
      %292 = vmatpush1.msra.mxu0 %v265
      %293 = vmatprep.subr.mxu0 0.0
      %294 = vmatpush1.msra.mxu0 %v264
      %295 = vmatprep.subr.mxu0 0.0
      %296 = vmatpush1.msra.mxu0 %v263
      %297 = vmatprep.subr.mxu0 0.0
      %298 = vmatpush1.msra.mxu0 %v262
      %299 = vmatprep.subr.mxu0 0.0
      %300 = vmatpush1.msra.mxu0 %v261
      %301 = vmatprep.subr.mxu0 0.0
      %302 = vmatpush1.msra.mxu0 %v260
      %303 = vmatprep.subr.mxu0 0.0
      %304 = vmatpush1.msra.mxu0 %v259
      %305 = vmatprep.subr.mxu0 0.0
      %306 = vmatpush1.msra.mxu0 %v258
      %307 = vmatprep.subr.mxu0 0.0
      %308 = vmatpush1.msra.mxu0 %v257
      %309 = vmatprep.subr.mxu0 0.0
      %310 = vmatpush1.msra.mxu0 %v256
      %311 = vmatprep.subr.mxu0 0.0
      %312 = vmatpush2.msra.mxu0 0.0
      %313 = vmatprep.subr.mxu0 0.0
      %314 = vmatpush2.msra.mxu0 0.0
      %315 = vmatprep.subr.mxu0 0.0
      %316 = vmatpush2.msra.mxu0 0.0
      %317 = vmatprep.subr.mxu0 0.0
      %318 = vmatpush2.msra.mxu0 0.0
      %319 = vmatprep.subr.mxu0 0.0
      %320 = vmatpush2.msra.mxu0 0.0
      %321 = vmatprep.subr.mxu0 0.0
      %322 = vmatpush2.msra.mxu0 0.0
      %323 = vmatprep.subr.mxu0 0.0
      %324 = vmatpush2.msra.mxu0 0.0
      %325 = vmatprep.subr.mxu0 0.0
      %326 = vmatpush2.msra.mxu0 0.0
      %327 = vmatprep.subr.mxu0 0.0
      %328 = vmatpush2.msra.mxu0 0.0
      %329 = vmatprep.subr.mxu0 0.0
      %330 = vmatpush2.msra.mxu0 0.0
      %331 = vmatprep.subr.mxu0 0.0
      %332 = vmatpush2.msra.mxu0 0.0
      %333 = vmatprep.subr.mxu0 0.0
      %334 = vmatpush2.msra.mxu0 0.0
      %335 = vmatprep.subr.mxu0 0.0
      %336 = vmatpush2.msra.mxu0 0.0
      %337 = vmatprep.subr.mxu0 0.0
      %338 = vmatpush2.msra.mxu0 0.0
      %339 = vmatprep.subr.mxu0 0.0
      %340 = vmatpush2.msra.mxu0 0.0
      %341 = vmatprep.subr.mxu0 0.0
      %342 = vmatpush2.msra.mxu0 0.0
      %343 = vmatprep.mubr.f32.mxu0 0.0
      %344 = vmatmul.mubr.f32.gmra.mxu0 %v253
      %v345 = vpop.f32.mrf.mxu0
      %v346 = vadd.f32 %v277, %v345
      %v347 = vpop.f32.mrf.mxu0
      %348 = vdwg.mxu0
      %349 = vmax.xlane.f32.xlu0 %v346
      %v350 = vpop.xlane.xlu0 %349
      %v351 = vsub.f32 %v346, %v350
      %v352 = vmul.f32 %v351, 1.442695
      %v353 = vpow.pop %v352
      %354 = vadd.xlane.f32.xlu0 %v353
      %v355 = vpop.xlane.xlu0 %354
      %v356 = vrcp.pop %v355
      %v357 = vmul.f32 %v353, %v356
      %358 = vst [vmem:[#allocation11] sm:$0xff] %v357
    $region53: #{tpu_custom_call.1} parent=1 // pred_fallthru
      _
    // Predicated region
    $region54: #{tpu_custom_call.1} parent=1 // pred_check
      _
    $region55: #{tpu_custom_call.1} parent=1 // pred_check_branch
      %360 = sbr.rel (0) target = $region57
    $region56: #{tpu_custom_call.1} parent=1 // pred_region
      %s362 = ssub.s32 128, 128
      %363 = vsyncadd [#allocation5], %s362
      %s365 = sshll.u32 [#allocation11], 4
      %s366 = int_to_ptr.vmem [resolvable:$true] %s365
      %368 = dma.vmem_to_hbm [thread:$0]  %s366, 128, %s7, [#allocation5]
    $region57: #{tpu_custom_call.1} parent=1 // pred_fallthru
      _
    // Predicated region
    $region58: #{tpu_custom_call.1} parent=1 // pred_check
      _
    $region59: #{tpu_custom_call.1} parent=1 // pred_check_branch
      %370 = sbr.rel (0) target = $region61
    $region60: #{tpu_custom_call.1} parent=1 // pred_region
      %371 = dma.done [#allocation5], 128
    $region61: #{tpu_custom_call.1} parent=1 // pred_fallthru
      _
    %372 = vsyncpa [#allocation4], 1
    %373 = vsyncpa [#allocation7], 1
    %374 = vsyncpa [#allocation10], 1
    %375 = vsyncpa [#allocation5], 1

</llo_original>
